<compile_context>
chip_gen: v6e
topology: v6e:2x2x1
jax: 0.10.0
libtpu: 0.0.40
codegen_flags: <defaults>
</compile_context>

<pallas_src>
import functools

import jax
import jax.numpy as jnp
from jax.experimental import pallas as pl
from jax.experimental.pallas import tpu as pltpu


def _edge_symmetric_kernel(eidx_ref, iota_ref, nodes_ref, out_ref):
    # eidx_ref : [1, 1, 2*tile_E] int32  lanes [0:tile_E)=src, [tile_E:2*tile_E)=dst
    # iota_ref : [N_pad, 2*tile_E] int32 grid-invariant node-id iota (hoisted)
    # nodes_ref: [T, N_pad]              resident transposed node-attr table
    # out_ref  : [2*T, tile_E]           rows [:T] = ti+tj, rows [T:] = ti-tj
    idx_both = eidx_ref[0]                       # [1, 2*tile_E]
    nodes_t = nodes_ref[...]                     # [T, N_pad]
    tile_e = idx_both.shape[1] // 2

    # Fused selection matrix for both endpoints: sel_t[n, e] = (idx_both[e] == n).
    sel_t = (iota_ref[...] == idx_both).astype(nodes_t.dtype)          # [N_pad, 2*tile_E]

    # Single MXU matmul gathers both endpoints; accumulate in f32.
    res = jnp.dot(nodes_t, sel_t, preferred_element_type=jnp.float32)  # [T, 2*tile_E]
    ti = res[:, :tile_e]
    tj = res[:, tile_e:]

    # Single lane-dense store of the whole [2T, tile_E] tile.
    # (Note: 2T not a multiple of 8 -> masked partial stores; perf-only hazard.)
    out_ref[...] = jnp.concatenate([ti + tj, ti - tj], axis=0).astype(out_ref.dtype)


def _default_tile_e(num_edges: int) -> int:
    # Target ~1024 edge lanes per grid step, but keep the grid length >= 2
    # (when there is enough work) so both v7x TensorCores get a share.
    target = 1024
    if num_edges >= 2 * target:
        return target
    half = pl.cdiv(num_edges, 2)
    return max(128, pl.cdiv(half, 128) * 128)


def _vmem_capacity_bytes() -> int:
    try:
        return int(pltpu.get_tpu_info().vmem_capacity_bytes)
    except Exception:
        return 64 * 1024 * 1024  # conservative: v7x per-TensorCore VMEM


def _is_v5e() -> bool:
    try:
        kind = jax.devices()[0].device_kind.lower()
    except Exception:
        return False
    return ("v5 lite" in kind) or ("v5lite" in kind) or ("v5e" in kind)


@functools.partial(
    jax.jit,
    static_argnames=("tile_e", "node_pad", "use_bf16_mxu", "edges_major"),
)
def edge_symmetric_embedding(node_attrs, edge_index, *, tile_e=None, node_pad=128,
                             use_bf16_mxu=None, edges_major=True):
    """node_attrs: [num_nodes, num_types] f32; edge_index: [2, num_edges] int.

    Returns edge_attrs [num_edges, 2*num_types] = concat(ti+tj, ti-tj) when
    edges_major=True (PyTorch layout), or the transposed [2*num_types, num_edges]
    slab when edges_major=False (skips the standalone output transpose).

    use_bf16_mxu: None = auto (bf16 on v6e/v7x, f32 on v5e). bf16 is exact for
    0/1 one-hot node attrs; pass False explicitly for arbitrary float attrs
    where ~2^-8 relative error on the table values is not acceptable.
    """
    num_nodes, num_types = node_attrs.shape
    num_edges = edge_index.shape[1]

    if tile_e is None:
        tile_e = _default_tile_e(num_edges)
    if use_bf16_mxu is None:
        use_bf16_mxu = not _is_v5e()

    # --- edge indices: pad E to a multiple of tile_e (padded edges point at
    # node 0, rows sliced off after the call), then pre-arrange per tile as
    # [src lanes | dst lanes] so the kernel reads one lane-dense row.
    num_edges_pad = pl.cdiv(num_edges, tile_e) * tile_e
    n_tiles = num_edges_pad // tile_e
    eidx = edge_index.astype(jnp.int32)
    if num_edges_pad != num_edges:
        eidx = jnp.pad(eidx, ((0, 0), (0, num_edges_pad - num_edges)))
    src = eidx[0].reshape(n_tiles, tile_e)
    dst = eidx[1].reshape(n_tiles, tile_e)
    eidx_packed = jnp.concatenate([src, dst], axis=1)[:, None, :]  # [n_tiles,1,2*tile_e]

    # --- node table: transpose to [T, N] (node dim lane-dense), pad N (the
    # matmul K dim) to a multiple of 128, choose MXU dtype per generation.
    num_nodes_pad = pl.cdiv(num_nodes, node_pad) * node_pad
    nodes_t = node_attrs.T                                           # [T, N]
    if num_nodes_pad != num_nodes:
        nodes_t = jnp.pad(nodes_t, ((0, 0), (0, num_nodes_pad - num_nodes)))
    mxu_dtype = jnp.bfloat16 if use_bf16_mxu else node_attrs.dtype
    nodes_t = nodes_t.astype(mxu_dtype)

    # --- grid-invariant node-id iota, hoisted out of the kernel body.
    node_iota = jax.lax.broadcasted_iota(jnp.int32, (num_nodes_pad, 2 * tile_e), 0)

    grid = (n_tiles,)

    # --- VMEM budget: resident table + iota (double-buffered by the pipeline),
    # in/out tiles (double-buffered), in-kernel sel matrix / compare / result.
    tbl_item = jnp.dtype(mxu_dtype).itemsize
    vmem_est = (
        2 * num_types * num_nodes_pad * tbl_item          # node table x2
        + 2 * num_nodes_pad * 2 * tile_e * 4              # hoisted iota x2
        + 2 * 2 * tile_e * 4                              # eidx tiles x2
        + 2 * 2 * num_types * tile_e * 4                  # out tiles x2
        + num_nodes_pad * 2 * tile_e * (tbl_item + 1)     # sel_t + bool compare
        + 2 * 2 * num_types * tile_e * 4                  # res f32 + epilogue temps
    )
    capacity = _vmem_capacity_bytes()
    cap = (capacity * 7) // 8                             # headroom under physical VMEM
    compiler_kwargs = {}
    # 14 MiB is below every generation's default scoped limit (16/32 MiB); raise
    # the limit whenever we might exceed it, capped generation-aware.
    if vmem_est > 14 * 1024 * 1024:
        compiler_kwargs["vmem_limit_bytes"] = int(min(cap, vmem_est * 3 // 2))

    out_t = pl.pallas_call(
        _edge_symmetric_kernel,
        out_shape=jax.ShapeDtypeStruct((2 * num_types, num_edges_pad),
                                       node_attrs.dtype),
        grid_spec=pltpu.PrefetchScalarGridSpec(
            num_scalar_prefetch=0,
            grid=grid,
            in_specs=[
                # one tile of pre-packed edge indices per grid step
                pl.BlockSpec((1, 1, 2 * tile_e), lambda e: (e, 0, 0)),
                # grid-invariant node-id iota (resident)
                pl.BlockSpec((num_nodes_pad, 2 * tile_e), lambda e: (0, 0)),
                # full node-attr table (resident across the grid)
                pl.BlockSpec((num_types, num_nodes_pad), lambda e: (0, 0)),
            ],
            out_specs=pl.BlockSpec((2 * num_types, tile_e), lambda e: (0, e)),
        ),
        compiler_params=pltpu.CompilerParams(
            dimension_semantics=("parallel",),
            **compiler_kwargs,
        ),
    )(eidx_packed, node_iota, nodes_t)

    out_t = out_t[:, :num_edges]          # [2T, E]  (rows 0..T-1 plus, T..2T-1 minus)
    if edges_major:
        # [2T, E] -> [E, 2T]; under a larger jit this transpose fuses with the
        # consumer.  Pass edges_major=False to get the [2T, E] slab directly.
        return out_t.T
    return out_t


def _reference(node_attrs, edge_index):
    ti = node_attrs[edge_index[0]]
    tj = node_attrs[edge_index[1]]
    return jnp.concatenate([ti + tj, ti - tj], axis=-1)


if __name__ == "__main__":
    key = jax.random.PRNGKey(0)
    k_types, k_edges = jax.random.split(key)

    num_types = 4
    num_nodes = 32
    num_edges = 600   # -> auto tile_e=384, grid=(2,)  (multiple grid steps)

    # Deterministic synthetic inputs: one-hot node attrs + random edge index.
    node_types = jax.random.randint(k_types, (num_nodes,), 0, num_types)
    node_attrs = jax.nn.one_hot(node_types, num_types, dtype=jnp.float32)
    edge_index = jax.random.randint(k_edges, (2, num_edges), 0, num_nodes,
                                    dtype=jnp.int32)

    out = edge_symmetric_embedding(node_attrs, edge_index)
    out = jax.block_until_ready(out)

    ref = _reference(node_attrs, edge_index)
    assert out.shape == (num_edges, 2 * num_types), out.shape
    assert jnp.allclose(out, ref, atol=1e-6), "mismatch vs reference"

    print("KERNEL_OK")
</pallas_src>

<mosaic_0001>
module attributes {stable_mosaic.version = 11 : i64} {
  func.func @_edge_symmetric_kernel(%arg0: i32, %arg1: memref<1x1x768xi32, #tpu.memory_space<vmem>>, %arg2: memref<128x768xi32, #tpu.memory_space<vmem>>, %arg3: memref<4x128xbf16, #tpu.memory_space<vmem>>, %arg4: memref<8x384xf32, #tpu.memory_space<vmem>>) attributes {dimension_semantics = [#tpu.dimension_semantics<parallel>], iteration_bounds = array<i64: 2>, scalar_prefetch = 0 : i64, scratch_operands = 0 : i64, tpu.core_type = #tpu.core_type<tc>, window_params = [{transform_indices = @transform_0, window_bounds = array<i64: 1, 1, 768>}, {pipeline_mode = #tpu.pipeline_mode<synchronous>, transform_indices = @transform_1, window_bounds = array<i64: 128, 768>}, {pipeline_mode = #tpu.pipeline_mode<synchronous>, transform_indices = @transform_2, window_bounds = array<i64: 4, 128>}, {transform_indices = @transform_3, window_bounds = array<i64: 8, 384>}]} {
    %c0 = arith.constant 0 : index
    %c0_0 = arith.constant 0 : index
    %c0_1 = arith.constant 0 : index
    %0 = vector.load %arg1[%c0, %c0_0, %c0_1] : memref<1x1x768xi32, #tpu.memory_space<vmem>>, vector<1x1x768xi32>
    %1 = vector.shape_cast %0 : vector<1x1x768xi32> to vector<1x768xi32>
    %c0_2 = arith.constant 0 : index
    %c0_3 = arith.constant 0 : index
    %2 = vector.load %arg3[%c0_2, %c0_3] : memref<4x128xbf16, #tpu.memory_space<vmem>>, vector<4x128xbf16>
    %c0_4 = arith.constant 0 : index
    %c0_5 = arith.constant 0 : index
    %3 = vector.load %arg2[%c0_4, %c0_5] : memref<128x768xi32, #tpu.memory_space<vmem>>, vector<128x768xi32>
    %4 = vector.broadcast %1 : vector<1x768xi32> to vector<128x768xi32>
    %5 = arith.cmpi eq, %3, %4 : vector<128x768xi32>
    %6 = arith.extui %5 : vector<128x768xi1> to vector<128x768xi32>
    %7 = arith.sitofp %6 : vector<128x768xi32> to vector<128x768xf32>
    %8 = arith.truncf %7 : vector<128x768xf32> to vector<128x768xbf16>
    %cst = arith.constant dense<0.000000e+00> : vector<4x768xf32>
    %9 = tpu.matmul %2, %8, %cst {dimension_numbers = #tpu.dot_dimension_numbers<[1], [0], [0], [1], [0, 0, 1, 1], [], []>} : vector<4x128xbf16>, vector<128x768xbf16>, vector<4x768xf32> -> vector<4x768xf32>
    %10 = vector.extract_strided_slice %9 {offsets = [0, 0], sizes = [4, 384], strides = [1, 1]} : vector<4x768xf32> to vector<4x384xf32>
    %11 = vector.extract_strided_slice %9 {offsets = [0, 384], sizes = [4, 384], strides = [1, 1]} : vector<4x768xf32> to vector<4x384xf32>
    %12 = arith.addf %10, %11 : vector<4x384xf32>
    %13 = arith.subf %10, %11 : vector<4x384xf32>
    %14 = tpu.concatenate %12, %13 in 0 : vector<4x384xf32>, vector<4x384xf32> -> vector<8x384xf32>
    %c0_6 = arith.constant 0 : index
    %c0_7 = arith.constant 0 : index
    %15 = vector.load %arg4[%c0_6, %c0_7] : memref<8x384xf32, #tpu.memory_space<vmem>>, vector<8x384xf32>
    tpu.vector_store %arg4[%c0_6, %c0_7], %14 {strides = array<i32>} : memref<8x384xf32, #tpu.memory_space<vmem>>, vector<8x384xf32>,
    return
  }
  func.func @transform_0(%arg0: i32) -> (i32, i32, i32) {
    %c0_i32 = arith.constant 0 : i32
    %c0_i32_0 = arith.constant 0 : i32
    %c0_i32_1 = arith.constant 0 : i32
    return %arg0, %c0_i32, %c0_i32_0 : i32, i32, i32
  }
  func.func @transform_1(%arg0: i32) -> (i32, i32) {
    %c0_i32 = arith.constant 0 : i32
    %c0_i32_0 = arith.constant 0 : i32
    %c0_i32_1 = arith.constant 0 : i32
    return %c0_i32, %c0_i32_0 : i32, i32
  }
  func.func @transform_2(%arg0: i32) -> (i32, i32) {
    %c0_i32 = arith.constant 0 : i32
    %c0_i32_0 = arith.constant 0 : i32
    %c0_i32_1 = arith.constant 0 : i32
    return %c0_i32, %c0_i32_0 : i32, i32
  }
  func.func @transform_3(%arg0: i32) -> (i32, i32) {
    %c0_i32 = arith.constant 0 : i32
    %c0_i32_0 = arith.constant 0 : i32
    return %c0_i32, %arg0 : i32, i32
  }
}

</mosaic_0001>

<llo_original>
// kernel: squeeze.2
$region0: #{squeeze.2}
  %s0 = inlined_call_operand.vmem [shape: s32[768], index: 0, kind: input, shape index: {}]
  %s1 = inlined_call_operand.vmem [shape: s32[2,384], index: 1, kind: output, shape index: {}]
  $region1: #{squeeze.2} parent=0
    #allocation0 [shape = 'u8[12288]{0}', space=vmem, size = 0x3000, scoped, tag = 'scoped mem for output reshape']
    %v2 = vld [vmem:[%s0] sm:$0x3f]
    %3 = vst [vmem:[#allocation0] ss:$8 sm:$0x7] %v2
    %s4 = scalar_lea.vmem [#allocation0], 4294967273
    %5 = vst [vmem:[%s4] ss:$8 sm:$0x38] %v2
    %s7 = sshll.u32 1, 2
    %s8 = ssub.s32 %s7, 1
    %v10 = vld [vmem:[#allocation0] sm:%s8]
    %s11 = sshll.u32 1, 2
    %s12 = ssub.s32 %s11, 1
    %13 = vst [vmem:[%s1] sm:%s12] %v10
    %s14 = scalar_lea.vmem [#allocation0], 8
    %v15 = vld [vmem:[%s14] sm:%s8]
    %s16 = sshll.u32 1, 2
    %s17 = ssub.s32 %s16, 1
    %s18 = scalar_lea.vmem %s1, 2
    %19 = vst [vmem:[%s18] sm:%s17] %v15
    %s20 = scalar_lea.vmem [#allocation0], 16
    %v21 = vld [vmem:[%s20] sm:%s8]
    %s22 = sshll.u32 1, 2
    %s23 = ssub.s32 %s22, 1
    %s24 = smul.addr 2, 2
    %s25 = scalar_lea.vmem %s1, %s24
    %26 = vst [vmem:[%s25] sm:%s23] %v21

// kernel: edge_symmetric_embedding.1
$region0: #{edge_symmetric_embedding.1}
  #allocation0 [shape = 'u32[]', space=smem, size = 0x4, offset = 0x4, fixed_abs, tag = 'smem constant byte address 0x4 - core index']
  #allocation1 [shape = 'u32[144,128]{1,0:T(1,128)}', space=vmem, size = 0x12000, scoped, tag = 'internal scratch']
  %s0 = inlined_call_operand.vmem [shape: s32[2,1,768], index: 0, kind: input, shape index: {}]
  %s1 = inlined_call_operand.vmem [shape: s32[128,768], index: 1, kind: input, shape index: {}]
  %s2 = inlined_call_operand.vmem [shape: bf16[4,128], index: 2, kind: input, shape index: {}]
  %s3 = inlined_call_operand.vmem [shape: f32[8,768], index: 3, kind: output, shape index: {}]
  %s4 = sld [smem:[#allocation0]]
  $region45: #{edge_symmetric_embedding.1} parent=0
    _
  %s6 = ssub.s32 1, %s4
  %s7 = scalar_select 0, %s6, %s4
  loop: start=0, step=1, limit=4
  $region2: #{edge_symmetric_embedding.1} parent=0 // loop_pre_header
    _
  $region3: #{edge_symmetric_embedding.1} parent=0 // loop_header
    %s9 = sphi 0, %s13
    %p10 = scmp.ge.s32.totalorder %s9, 4
    %s19 = sphi 0, %s21
    %s22 = sphi 0, %s19
    %s23 = sphi 0, %s22
    %s39 = sphi 0, %s23
    %s43 = sphi 0, %s43
    %s45 = sphi 0, %s43
    %s46 = sphi 0, %s45
    %s60 = sphi 0, %s46
    %s64 = sphi 0, %s64
    %s66 = sphi 0, %s64
    %s67 = sphi 0, %s66
    %s81 = sphi 0, %s67
    %s87 = sphi 0, %s89
    %s90 = sphi 0, %s87
    %s91 = sphi 0, %s90
    %s107 = sphi 0, %s91
  $region4: #{edge_symmetric_embedding.1} parent=0 // loop_header_branch
    %12 = sbr.rel (%p10) target = $region8
  $region5: #{edge_symmetric_embedding.1} parent=0 // loop_body
    %s14 = ssub.s32 %s9, 1
    %s15 = ssub.s32 %s9, 2
    %s16 = sadd.s32 %s9, 1
    %s17 = ssub.s32 %s9, %s16
    %p18 = scmp.eq.s32.totalorder %s17, 0
    %s20 = sadd.s32 %s19, 1
    %s21 = scalar_select %p18, %s19, %s20
    %p24 = pneg %p18
    %p25 = scmp.eq.s32.totalorder %s9, 1
    %p26 = por %p24, %p25
    %p27 = scmp.ne.s32.totalorder %s19, %s22
    %p28 = scmp.eq.s32.totalorder %s9, 0
    %p29 = por %p27, %p28
    %p30 = scmp.ne.s32.totalorder %s19, %s22
    %p31 = scmp.eq.s32.totalorder %s14, 1
    %p32 = por %p30, %p31
    %p33 = scmp.ne.s32.totalorder %s22, %s23
    %p34 = scmp.eq.s32.totalorder %s14, 0
    %p35 = por %p33, %p34
    %p36 = scmp.ne.s32.totalorder %s22, %s23
    %p37 = scmp.eq.s32.totalorder %s15, 1
    %p38 = por %p36, %p37
    %p40 = scmp.ne.s32.totalorder %s23, %s39
    %p41 = scmp.eq.s32.totalorder %s15, 0
    %p42 = por %p40, %p41
    %s44 = sadd.s32 %s43, 1
    %p47 = scmp.eq.s32.totalorder %s9, 1
    %p48 = scmp.ne.s32.totalorder %s43, %s45
    %p49 = scmp.eq.s32.totalorder %s9, 0
    %p50 = por %p48, %p49
    %p51 = scmp.ne.s32.totalorder %s43, %s45
    %p52 = scmp.eq.s32.totalorder %s14, 1
    %p53 = por %p51, %p52
    %p54 = scmp.ne.s32.totalorder %s45, %s46
    %p55 = scmp.eq.s32.totalorder %s14, 0
    %p56 = por %p54, %p55
    %p57 = scmp.ne.s32.totalorder %s45, %s46
    %p58 = scmp.eq.s32.totalorder %s15, 1
    %p59 = por %p57, %p58
    %p61 = scmp.ne.s32.totalorder %s46, %s60
    %p62 = scmp.eq.s32.totalorder %s15, 0
    %p63 = por %p61, %p62
    %s65 = sadd.s32 %s64, 1
    %p68 = scmp.eq.s32.totalorder %s9, 1
    %p69 = scmp.ne.s32.totalorder %s64, %s66
    %p70 = scmp.eq.s32.totalorder %s9, 0
    %p71 = por %p69, %p70
    %p72 = scmp.ne.s32.totalorder %s64, %s66
    %p73 = scmp.eq.s32.totalorder %s14, 1
    %p74 = por %p72, %p73
    %p75 = scmp.ne.s32.totalorder %s66, %s67
    %p76 = scmp.eq.s32.totalorder %s14, 0
    %p77 = por %p75, %p76
    %p78 = scmp.ne.s32.totalorder %s66, %s67
    %p79 = scmp.eq.s32.totalorder %s15, 1
    %p80 = por %p78, %p79
    %p82 = scmp.ne.s32.totalorder %s67, %s81
    %p83 = scmp.eq.s32.totalorder %s15, 0
    %p84 = por %p82, %p83
    %s85 = ssub.s32 %s9, %s16
    %p86 = scmp.eq.s32.totalorder %s85, 0
    %s88 = sadd.s32 %s87, 1
    %s89 = scalar_select %p86, %s87, %s88
    %p92 = pneg %p86
    %p93 = scmp.eq.s32.totalorder %s9, 1
    %p94 = por %p92, %p93
    %p95 = scmp.ne.s32.totalorder %s87, %s90
    %p96 = scmp.eq.s32.totalorder %s9, 0
    %p97 = por %p95, %p96
    %p98 = scmp.ne.s32.totalorder %s87, %s90
    %p99 = scmp.eq.s32.totalorder %s14, 1
    %p100 = por %p98, %p99
    %p101 = scmp.ne.s32.totalorder %s90, %s91
    %p102 = scmp.eq.s32.totalorder %s14, 0
    %p103 = por %p101, %p102
    %p104 = scmp.ne.s32.totalorder %s90, %s91
    %p105 = scmp.eq.s32.totalorder %s15, 1
    %p106 = por %p104, %p105
    %p108 = scmp.ne.s32.totalorder %s91, %s107
    %p109 = scmp.eq.s32.totalorder %s15, 0
    %p110 = por %p108, %p109
    %p111 = scmp.le.s32.totalorder 1, %s9
    %p112 = scmp.lt.s32.totalorder %s9, 3
    %p113 = pnand %p111, %p112
    %p114 = pneg %p113
    // Predicated region
    $region9: #{edge_symmetric_embedding.1} parent=5 // pred_check
      _
    $region10: #{edge_symmetric_embedding.1} parent=5 // pred_check_branch
      %116 = sbr.rel (%p113) target = $region12
    $region11: #{edge_symmetric_embedding.1} parent=5 // pred_region
      %s117 = ssub.s32 %s9, 1
      // Predicated region
      $region13: #{edge_symmetric_embedding.1} parent=11 // pred_check
        %p118 = pneg %p56
      $region14: #{edge_symmetric_embedding.1} parent=11 // pred_check_branch
        %120 = sbr.rel (%p118) target = $region16
      $region15: #{edge_symmetric_embedding.1} parent=11 // pred_region
        _
      $region16: #{edge_symmetric_embedding.1} parent=11 // pred_fallthru
        _
      // Predicated region
      $region17: #{edge_symmetric_embedding.1} parent=11 // pred_check
        %p121 = pneg %p77
      $region18: #{edge_symmetric_embedding.1} parent=11 // pred_check_branch
        %123 = sbr.rel (%p121) target = $region20
      $region19: #{edge_symmetric_embedding.1} parent=11 // pred_region
        _
      $region20: #{edge_symmetric_embedding.1} parent=11 // pred_fallthru
        _
    $region12: #{edge_symmetric_embedding.1} parent=5 // pred_fallthru
      _
    %p124 = scmp.lt.s32.totalorder %s9, 2
    // Predicated region
    $region21: #{edge_symmetric_embedding.1} parent=5 // pred_check
      %p125 = pneg %p124
    $region22: #{edge_symmetric_embedding.1} parent=5 // pred_check_branch
      %127 = sbr.rel (%p125) target = $region24
    $region23: #{edge_symmetric_embedding.1} parent=5 // pred_region
      // Predicated region
      $region25: #{edge_symmetric_embedding.1} parent=23 // pred_check
        %p128 = pneg %p29
      $region26: #{edge_symmetric_embedding.1} parent=23 // pred_check_branch
        %130 = sbr.rel (%p128) target = $region28
      $region27: #{edge_symmetric_embedding.1} parent=23 // pred_region
        %p131 = scmp.lt.s32.totalorder %s9, 1
        %s132 = scalar_select %p131, %s9, 1
        %s133 = smul.addr %s132, 6
        %s134 = scalar_lea.vmem %s0, %s133
      $region28: #{edge_symmetric_embedding.1} parent=23 // pred_fallthru
        _
    $region24: #{edge_symmetric_embedding.1} parent=5 // pred_fallthru
      _
    %p135 = scmp.le.s32.totalorder 1, %s9
    %p136 = scmp.lt.s32.totalorder %s9, 3
    %p137 = pnand %p135, %p136
    %p138 = pneg %p137
    // Predicated region
    $region29: #{edge_symmetric_embedding.1} parent=5 // pred_check
      _
    $region30: #{edge_symmetric_embedding.1} parent=5 // pred_check_branch
      %140 = sbr.rel (%p137) target = $region32
    $region31: #{edge_symmetric_embedding.1} parent=5 // pred_region
      %s141 = ssub.s32 %s9, 1
      %p142 = scmp.lt.s32.totalorder %s14, 1
      %s143 = scalar_select %p142, %s14, 1
      %s144 = smul.addr %s143, 6
      %s145 = scalar_lea.vmem %s0, %s144
      %p146 = pneg %p35
      %p147 = pneg %p32
      %p148 = pneg %p56
      %p149 = pneg %p53
      %p150 = pneg %p77
      %p151 = pneg %p74
      %p152 = pneg %p103
      %p153 = pneg %p100
      %s154 = smul.u32 3, %s14
      %p155 = scmp.lt.s32.totalorder %s154, 5
      %s156 = scalar_select %p155, %s154, 5
      %s157 = smul.addr %s156, 8
      %s158 = scalar_lea.vmem %s3, %s157
      %p159 = scmp.lt.s32.totalorder %s14, 1
      %s160 = scalar_select %p159, %s14, 1
      %s161 = smul.addr %s160, 6
      %s162 = scalar_lea.vmem %s0, %s161
      %s163 = smul.u32 3, %s14
      %p164 = scmp.lt.s32.totalorder %s163, 5
      %s165 = scalar_select %p164, %s163, 5
      %s166 = smul.addr %s165, 8
      %s167 = scalar_lea.vmem %s3, %s166
      %s168 = smul.u32 3, %s14
      %v170 = vld [vmem:[%s162] sm:$0x3f]
      %v171 = vld [vmem:[%s2] sm:$0x3]
      %v172 = vld [vmem:[%s1] sm:$0xff]
      %v173 = vld [vmem:[%s1 + $0x8] sm:$0xff]
      %v174 = vld [vmem:[%s1 + $0x10] sm:$0xff]
      %v175 = vld [vmem:[%s1 + $0x18] sm:$0xff]
      %v176 = vld [vmem:[%s1 + $0x20] sm:$0xff]
      %v177 = vld [vmem:[%s1 + $0x28] sm:$0xff]
      %v178 = vld [vmem:[%s1 + $0x30] sm:$0xff]
      %v179 = vld [vmem:[%s1 + $0x38] sm:$0xff]
      %v180 = vld [vmem:[%s1 + $0x40] sm:$0xff]
      %v181 = vld [vmem:[%s1 + $0x48] sm:$0xff]
      %v182 = vld [vmem:[%s1 + $0x50] sm:$0xff]
      %v183 = vld [vmem:[%s1 + $0x58] sm:$0xff]
      %v184 = vld [vmem:[%s1 + $0x60] sm:$0xff]
      %v185 = vld [vmem:[%s1 + $0x68] sm:$0xff]
      %v186 = vld [vmem:[%s1 + $0x70] sm:$0xff]
      %v187 = vld [vmem:[%s1 + $0x78] sm:$0xff]
      %v188 = vld [vmem:[%s1 + $0x80] sm:$0xff]
      %v189 = vld [vmem:[%s1 + $0x88] sm:$0xff]
      %v190 = vld [vmem:[%s1 + $0x90] sm:$0xff]
      %v191 = vld [vmem:[%s1 + $0x98] sm:$0xff]
      %v192 = vld [vmem:[%s1 + $0xa0] sm:$0xff]
      %v193 = vld [vmem:[%s1 + $0xa8] sm:$0xff]
      %v194 = vld [vmem:[%s1 + $0xb0] sm:$0xff]
      %v195 = vld [vmem:[%s1 + $0xb8] sm:$0xff]
      %v196 = vld [vmem:[%s1 + $0xc0] sm:$0xff]
      %v197 = vld [vmem:[%s1 + $0xc8] sm:$0xff]
      %v198 = vld [vmem:[%s1 + $0xd0] sm:$0xff]
      %v199 = vld [vmem:[%s1 + $0xd8] sm:$0xff]
      %v200 = vld [vmem:[%s1 + $0xe0] sm:$0xff]
      %v201 = vld [vmem:[%s1 + $0xe8] sm:$0xff]
      %v202 = vld [vmem:[%s1 + $0xf0] sm:$0xff]
      %v203 = vld [vmem:[%s1 + $0xf8] sm:$0xff]
      %v204 = vld [vmem:[%s1 + $0x100] sm:$0xff]
      %v205 = vld [vmem:[%s1 + $0x108] sm:$0xff]
      %v206 = vld [vmem:[%s1 + $0x110] sm:$0xff]
      %v207 = vld [vmem:[%s1 + $0x118] sm:$0xff]
      %v208 = vld [vmem:[%s1 + $0x120] sm:$0xff]
      %v209 = vld [vmem:[%s1 + $0x128] sm:$0xff]
      %v210 = vld [vmem:[%s1 + $0x130] sm:$0xff]
      %v211 = vld [vmem:[%s1 + $0x138] sm:$0xff]
      %v212 = vld [vmem:[%s1 + $0x140] sm:$0xff]
      %v213 = vld [vmem:[%s1 + $0x148] sm:$0xff]
      %v214 = vld [vmem:[%s1 + $0x150] sm:$0xff]
      %v215 = vld [vmem:[%s1 + $0x158] sm:$0xff]
      %v216 = vld [vmem:[%s1 + $0x160] sm:$0xff]
      %v217 = vld [vmem:[%s1 + $0x168] sm:$0xff]
      %v218 = vld [vmem:[%s1 + $0x170] sm:$0xff]
      %v219 = vld [vmem:[%s1 + $0x178] sm:$0xff]
      %v220 = vld [vmem:[%s1 + $0x180] sm:$0xff]
      %v221 = vld [vmem:[%s1 + $0x188] sm:$0xff]
      %v222 = vld [vmem:[%s1 + $0x190] sm:$0xff]
      %v223 = vld [vmem:[%s1 + $0x198] sm:$0xff]
      %v224 = vld [vmem:[%s1 + $0x1a0] sm:$0xff]
      %v225 = vld [vmem:[%s1 + $0x1a8] sm:$0xff]
      %v226 = vld [vmem:[%s1 + $0x1b0] sm:$0xff]
      %v227 = vld [vmem:[%s1 + $0x1b8] sm:$0xff]
      %v228 = vld [vmem:[%s1 + $0x1c0] sm:$0xff]
      %v229 = vld [vmem:[%s1 + $0x1c8] sm:$0xff]
      %v230 = vld [vmem:[%s1 + $0x1d0] sm:$0xff]
      %v231 = vld [vmem:[%s1 + $0x1d8] sm:$0xff]
      %v232 = vld [vmem:[%s1 + $0x1e0] sm:$0xff]
      %v233 = vld [vmem:[%s1 + $0x1e8] sm:$0xff]
      %v234 = vld [vmem:[%s1 + $0x1f0] sm:$0xff]
      %v235 = vld [vmem:[%s1 + $0x1f8] sm:$0xff]
      %v236 = vld [vmem:[%s1 + $0x200] sm:$0xff]
      %v237 = vld [vmem:[%s1 + $0x208] sm:$0xff]
      %v238 = vld [vmem:[%s1 + $0x210] sm:$0xff]
      %v239 = vld [vmem:[%s1 + $0x218] sm:$0xff]
      %v240 = vld [vmem:[%s1 + $0x220] sm:$0xff]
      %v241 = vld [vmem:[%s1 + $0x228] sm:$0xff]
      %v242 = vld [vmem:[%s1 + $0x230] sm:$0xff]
      %v243 = vld [vmem:[%s1 + $0x238] sm:$0xff]
      %v244 = vld [vmem:[%s1 + $0x240] sm:$0xff]
      %v245 = vld [vmem:[%s1 + $0x248] sm:$0xff]
      %v246 = vld [vmem:[%s1 + $0x250] sm:$0xff]
      %v247 = vld [vmem:[%s1 + $0x258] sm:$0xff]
      %v248 = vld [vmem:[%s1 + $0x260] sm:$0xff]
      %v249 = vld [vmem:[%s1 + $0x268] sm:$0xff]
      %v250 = vld [vmem:[%s1 + $0x270] sm:$0xff]
      %v251 = vld [vmem:[%s1 + $0x278] sm:$0xff]
      %v252 = vld [vmem:[%s1 + $0x280] sm:$0xff]
      %v253 = vld [vmem:[%s1 + $0x288] sm:$0xff]
      %v254 = vld [vmem:[%s1 + $0x290] sm:$0xff]
      %v255 = vld [vmem:[%s1 + $0x298] sm:$0xff]
      %v256 = vld [vmem:[%s1 + $0x2a0] sm:$0xff]
      %v257 = vld [vmem:[%s1 + $0x2a8] sm:$0xff]
      %v258 = vld [vmem:[%s1 + $0x2b0] sm:$0xff]
      %v259 = vld [vmem:[%s1 + $0x2b8] sm:$0xff]
      %v260 = vld [vmem:[%s1 + $0x2c0] sm:$0xff]
      %v261 = vld [vmem:[%s1 + $0x2c8] sm:$0xff]
      %v262 = vld [vmem:[%s1 + $0x2d0] sm:$0xff]
      %v263 = vld [vmem:[%s1 + $0x2d8] sm:$0xff]
      %v264 = vld [vmem:[%s1 + $0x2e0] sm:$0xff]
      %v265 = vld [vmem:[%s1 + $0x2e8] sm:$0xff]
      %v266 = vld [vmem:[%s1 + $0x2f0] sm:$0xff]
      %v267 = vld [vmem:[%s1 + $0x2f8] sm:$0xff]
      %v268 = vlaneseq
      %v269 = vshrl.u32 %v268, 7
      %v270 = vsub.s32 0, %v269
      %v271 = vrot.slane %v170, %v270
      %v272 = vlaneseq
      %v273 = vshrl.u32 %v272, 7
      %v274 = vsub.s32 1, %v273
      %v275 = vrot.slane %v170, %v274
      %v276 = vlaneseq
      %v277 = vshrl.u32 %v276, 7
      %v278 = vsub.s32 2, %v277
      %v279 = vrot.slane %v170, %v278
      %v280 = vlaneseq
      %v281 = vshrl.u32 %v280, 7
      %v282 = vsub.s32 3, %v281
      %v283 = vrot.slane %v170, %v282
      %v284 = vlaneseq
      %v285 = vshrl.u32 %v284, 7
      %v286 = vsub.s32 4, %v285
      %v287 = vrot.slane %v170, %v286
      %v288 = vlaneseq
      %v289 = vshrl.u32 %v288, 7
      %v290 = vsub.s32 5, %v289
      %v291 = vrot.slane %v170, %v290
      %vm292 = vcmp.eq.s32.totalorder %v172, %v271
      %vm293 = vcmp.eq.s32.totalorder %v173, %v275
      %vm294 = vcmp.eq.s32.totalorder %v174, %v279
      %vm295 = vcmp.eq.s32.totalorder %v175, %v283
      %vm296 = vcmp.eq.s32.totalorder %v176, %v287
      %vm297 = vcmp.eq.s32.totalorder %v177, %v291
      %vm298 = vcmp.eq.s32.totalorder %v178, %v271
      %vm299 = vcmp.eq.s32.totalorder %v179, %v275
      %vm300 = vcmp.eq.s32.totalorder %v180, %v279
      %vm301 = vcmp.eq.s32.totalorder %v181, %v283
      %vm302 = vcmp.eq.s32.totalorder %v182, %v287
      %vm303 = vcmp.eq.s32.totalorder %v183, %v291
      %vm304 = vcmp.eq.s32.totalorder %v184, %v271
      %vm305 = vcmp.eq.s32.totalorder %v185, %v275
      %vm306 = vcmp.eq.s32.totalorder %v186, %v279
      %vm307 = vcmp.eq.s32.totalorder %v187, %v283
      %vm308 = vcmp.eq.s32.totalorder %v188, %v287
      %vm309 = vcmp.eq.s32.totalorder %v189, %v291
      %vm310 = vcmp.eq.s32.totalorder %v190, %v271
      %vm311 = vcmp.eq.s32.totalorder %v191, %v275
      %vm312 = vcmp.eq.s32.totalorder %v192, %v279
      %vm313 = vcmp.eq.s32.totalorder %v193, %v283
      %vm314 = vcmp.eq.s32.totalorder %v194, %v287
      %vm315 = vcmp.eq.s32.totalorder %v195, %v291
      %vm316 = vcmp.eq.s32.totalorder %v196, %v271
      %vm317 = vcmp.eq.s32.totalorder %v197, %v275
      %vm318 = vcmp.eq.s32.totalorder %v198, %v279
      %vm319 = vcmp.eq.s32.totalorder %v199, %v283
      %vm320 = vcmp.eq.s32.totalorder %v200, %v287
      %vm321 = vcmp.eq.s32.totalorder %v201, %v291
      %vm322 = vcmp.eq.s32.totalorder %v202, %v271
      %vm323 = vcmp.eq.s32.totalorder %v203, %v275
      %vm324 = vcmp.eq.s32.totalorder %v204, %v279
      %vm325 = vcmp.eq.s32.totalorder %v205, %v283
      %vm326 = vcmp.eq.s32.totalorder %v206, %v287
      %vm327 = vcmp.eq.s32.totalorder %v207, %v291
      %vm328 = vcmp.eq.s32.totalorder %v208, %v271
      %vm329 = vcmp.eq.s32.totalorder %v209, %v275
      %vm330 = vcmp.eq.s32.totalorder %v210, %v279
      %vm331 = vcmp.eq.s32.totalorder %v211, %v283
      %vm332 = vcmp.eq.s32.totalorder %v212, %v287
      %vm333 = vcmp.eq.s32.totalorder %v213, %v291
      %vm334 = vcmp.eq.s32.totalorder %v214, %v271
      %vm335 = vcmp.eq.s32.totalorder %v215, %v275
      %vm336 = vcmp.eq.s32.totalorder %v216, %v279
      %vm337 = vcmp.eq.s32.totalorder %v217, %v283
      %vm338 = vcmp.eq.s32.totalorder %v218, %v287
      %vm339 = vcmp.eq.s32.totalorder %v219, %v291
      %vm340 = vcmp.eq.s32.totalorder %v220, %v271
      %vm341 = vcmp.eq.s32.totalorder %v221, %v275
      %vm342 = vcmp.eq.s32.totalorder %v222, %v279
      %vm343 = vcmp.eq.s32.totalorder %v223, %v283
      %vm344 = vcmp.eq.s32.totalorder %v224, %v287
      %vm345 = vcmp.eq.s32.totalorder %v225, %v291
      %vm346 = vcmp.eq.s32.totalorder %v226, %v271
      %vm347 = vcmp.eq.s32.totalorder %v227, %v275
      %vm348 = vcmp.eq.s32.totalorder %v228, %v279
      %vm349 = vcmp.eq.s32.totalorder %v229, %v283
      %vm350 = vcmp.eq.s32.totalorder %v230, %v287
      %vm351 = vcmp.eq.s32.totalorder %v231, %v291
      %vm352 = vcmp.eq.s32.totalorder %v232, %v271
      %vm353 = vcmp.eq.s32.totalorder %v233, %v275
      %vm354 = vcmp.eq.s32.totalorder %v234, %v279
      %vm355 = vcmp.eq.s32.totalorder %v235, %v283
      %vm356 = vcmp.eq.s32.totalorder %v236, %v287
      %vm357 = vcmp.eq.s32.totalorder %v237, %v291
      %vm358 = vcmp.eq.s32.totalorder %v238, %v271
      %vm359 = vcmp.eq.s32.totalorder %v239, %v275
      %vm360 = vcmp.eq.s32.totalorder %v240, %v279
      %vm361 = vcmp.eq.s32.totalorder %v241, %v283
      %vm362 = vcmp.eq.s32.totalorder %v242, %v287
      %vm363 = vcmp.eq.s32.totalorder %v243, %v291
      %vm364 = vcmp.eq.s32.totalorder %v244, %v271
      %vm365 = vcmp.eq.s32.totalorder %v245, %v275
      %vm366 = vcmp.eq.s32.totalorder %v246, %v279
      %vm367 = vcmp.eq.s32.totalorder %v247, %v283
      %vm368 = vcmp.eq.s32.totalorder %v248, %v287
      %vm369 = vcmp.eq.s32.totalorder %v249, %v291
      %vm370 = vcmp.eq.s32.totalorder %v250, %v271
      %vm371 = vcmp.eq.s32.totalorder %v251, %v275
      %vm372 = vcmp.eq.s32.totalorder %v252, %v279
      %vm373 = vcmp.eq.s32.totalorder %v253, %v283
      %vm374 = vcmp.eq.s32.totalorder %v254, %v287
      %vm375 = vcmp.eq.s32.totalorder %v255, %v291
      %vm376 = vcmp.eq.s32.totalorder %v256, %v271
      %vm377 = vcmp.eq.s32.totalorder %v257, %v275
      %vm378 = vcmp.eq.s32.totalorder %v258, %v279
      %vm379 = vcmp.eq.s32.totalorder %v259, %v283
      %vm380 = vcmp.eq.s32.totalorder %v260, %v287
      %vm381 = vcmp.eq.s32.totalorder %v261, %v291
      %vm382 = vcmp.eq.s32.totalorder %v262, %v271
      %vm383 = vcmp.eq.s32.totalorder %v263, %v275
      %vm384 = vcmp.eq.s32.totalorder %v264, %v279
      %vm385 = vcmp.eq.s32.totalorder %v265, %v283
      %vm386 = vcmp.eq.s32.totalorder %v266, %v287
      %vm387 = vcmp.eq.s32.totalorder %v267, %v291
      %v388 = vsel %vm292, 1, 0
      %v389 = vsel %vm293, 1, 0
      %v390 = vsel %vm294, 1, 0
      %v391 = vsel %vm295, 1, 0
      %v392 = vsel %vm296, 1, 0
      %v393 = vsel %vm297, 1, 0
      %v394 = vsel %vm298, 1, 0
      %v395 = vsel %vm299, 1, 0
      %v396 = vsel %vm300, 1, 0
      %v397 = vsel %vm301, 1, 0
      %v398 = vsel %vm302, 1, 0
      %v399 = vsel %vm303, 1, 0
      %v400 = vsel %vm304, 1, 0
      %v401 = vsel %vm305, 1, 0
      %v402 = vsel %vm306, 1, 0
      %v403 = vsel %vm307, 1, 0
      %v404 = vsel %vm308, 1, 0
      %v405 = vsel %vm309, 1, 0
      %v406 = vsel %vm310, 1, 0
      %v407 = vsel %vm311, 1, 0
      %v408 = vsel %vm312, 1, 0
      %v409 = vsel %vm313, 1, 0
      %v410 = vsel %vm314, 1, 0
      %v411 = vsel %vm315, 1, 0
      %v412 = vsel %vm316, 1, 0
      %v413 = vsel %vm317, 1, 0
      %v414 = vsel %vm318, 1, 0
      %v415 = vsel %vm319, 1, 0
      %v416 = vsel %vm320, 1, 0
      %v417 = vsel %vm321, 1, 0
      %v418 = vsel %vm322, 1, 0
      %v419 = vsel %vm323, 1, 0
      %v420 = vsel %vm324, 1, 0
      %v421 = vsel %vm325, 1, 0
      %v422 = vsel %vm326, 1, 0
      %v423 = vsel %vm327, 1, 0
      %v424 = vsel %vm328, 1, 0
      %v425 = vsel %vm329, 1, 0
      %v426 = vsel %vm330, 1, 0
      %v427 = vsel %vm331, 1, 0
      %v428 = vsel %vm332, 1, 0
      %v429 = vsel %vm333, 1, 0
      %v430 = vsel %vm334, 1, 0
      %v431 = vsel %vm335, 1, 0
      %v432 = vsel %vm336, 1, 0
      %v433 = vsel %vm337, 1, 0
      %v434 = vsel %vm338, 1, 0
      %v435 = vsel %vm339, 1, 0
      %v436 = vsel %vm340, 1, 0
      %v437 = vsel %vm341, 1, 0
      %v438 = vsel %vm342, 1, 0
      %v439 = vsel %vm343, 1, 0
      %v440 = vsel %vm344, 1, 0
      %v441 = vsel %vm345, 1, 0
      %v442 = vsel %vm346, 1, 0
      %v443 = vsel %vm347, 1, 0
      %v444 = vsel %vm348, 1, 0
      %v445 = vsel %vm349, 1, 0
      %v446 = vsel %vm350, 1, 0
      %v447 = vsel %vm351, 1, 0
      %v448 = vsel %vm352, 1, 0
      %v449 = vsel %vm353, 1, 0
      %v450 = vsel %vm354, 1, 0
      %v451 = vsel %vm355, 1, 0
      %v452 = vsel %vm356, 1, 0
      %v453 = vsel %vm357, 1, 0
      %v454 = vsel %vm358, 1, 0
      %v455 = vsel %vm359, 1, 0
      %v456 = vsel %vm360, 1, 0
      %v457 = vsel %vm361, 1, 0
      %v458 = vsel %vm362, 1, 0
      %v459 = vsel %vm363, 1, 0
      %v460 = vsel %vm364, 1, 0
      %v461 = vsel %vm365, 1, 0
      %v462 = vsel %vm366, 1, 0
      %v463 = vsel %vm367, 1, 0
      %v464 = vsel %vm368, 1, 0
      %v465 = vsel %vm369, 1, 0
      %v466 = vsel %vm370, 1, 0
      %v467 = vsel %vm371, 1, 0
      %v468 = vsel %vm372, 1, 0
      %v469 = vsel %vm373, 1, 0
      %v470 = vsel %vm374, 1, 0
      %v471 = vsel %vm375, 1, 0
      %v472 = vsel %vm376, 1, 0
      %v473 = vsel %vm377, 1, 0
      %v474 = vsel %vm378, 1, 0
      %v475 = vsel %vm379, 1, 0
      %v476 = vsel %vm380, 1, 0
      %v477 = vsel %vm381, 1, 0
      %v478 = vsel %vm382, 1, 0
      %v479 = vsel %vm383, 1, 0
      %v480 = vsel %vm384, 1, 0
      %v481 = vsel %vm385, 1, 0
      %v482 = vsel %vm386, 1, 0
      %v483 = vsel %vm387, 1, 0
      %v484 = vcvt.s32.f32 %v388
      %v485 = vcvt.s32.f32 %v389
      %v486 = vcvt.s32.f32 %v390
      %v487 = vcvt.s32.f32 %v391
      %v488 = vcvt.s32.f32 %v392
      %v489 = vcvt.s32.f32 %v393
      %v490 = vcvt.s32.f32 %v394
      %v491 = vcvt.s32.f32 %v395
      %v492 = vcvt.s32.f32 %v396
      %v493 = vcvt.s32.f32 %v397
      %v494 = vcvt.s32.f32 %v398
      %v495 = vcvt.s32.f32 %v399
      %v496 = vcvt.s32.f32 %v400
      %v497 = vcvt.s32.f32 %v401
      %v498 = vcvt.s32.f32 %v402
      %v499 = vcvt.s32.f32 %v403
      %v500 = vcvt.s32.f32 %v404
      %v501 = vcvt.s32.f32 %v405
      %v502 = vcvt.s32.f32 %v406
      %v503 = vcvt.s32.f32 %v407
      %v504 = vcvt.s32.f32 %v408
      %v505 = vcvt.s32.f32 %v409
      %v506 = vcvt.s32.f32 %v410
      %v507 = vcvt.s32.f32 %v411
      %v508 = vcvt.s32.f32 %v412
      %v509 = vcvt.s32.f32 %v413
      %v510 = vcvt.s32.f32 %v414
      %v511 = vcvt.s32.f32 %v415
      %v512 = vcvt.s32.f32 %v416
      %v513 = vcvt.s32.f32 %v417
      %v514 = vcvt.s32.f32 %v418
      %v515 = vcvt.s32.f32 %v419
      %v516 = vcvt.s32.f32 %v420
      %v517 = vcvt.s32.f32 %v421
      %v518 = vcvt.s32.f32 %v422
      %v519 = vcvt.s32.f32 %v423
      %v520 = vcvt.s32.f32 %v424
      %v521 = vcvt.s32.f32 %v425
      %v522 = vcvt.s32.f32 %v426
      %v523 = vcvt.s32.f32 %v427
      %v524 = vcvt.s32.f32 %v428
      %v525 = vcvt.s32.f32 %v429
      %v526 = vcvt.s32.f32 %v430
      %v527 = vcvt.s32.f32 %v431
      %v528 = vcvt.s32.f32 %v432
      %v529 = vcvt.s32.f32 %v433
      %v530 = vcvt.s32.f32 %v434
      %v531 = vcvt.s32.f32 %v435
      %v532 = vcvt.s32.f32 %v436
      %v533 = vcvt.s32.f32 %v437
      %v534 = vcvt.s32.f32 %v438
      %v535 = vcvt.s32.f32 %v439
      %v536 = vcvt.s32.f32 %v440
      %v537 = vcvt.s32.f32 %v441
      %v538 = vcvt.s32.f32 %v442
      %v539 = vcvt.s32.f32 %v443
      %v540 = vcvt.s32.f32 %v444
      %v541 = vcvt.s32.f32 %v445
      %v542 = vcvt.s32.f32 %v446
      %v543 = vcvt.s32.f32 %v447
      %v544 = vcvt.s32.f32 %v448
      %v545 = vcvt.s32.f32 %v449
      %v546 = vcvt.s32.f32 %v450
      %v547 = vcvt.s32.f32 %v451
      %v548 = vcvt.s32.f32 %v452
      %v549 = vcvt.s32.f32 %v453
      %v550 = vcvt.s32.f32 %v454
      %v551 = vcvt.s32.f32 %v455
      %v552 = vcvt.s32.f32 %v456
      %v553 = vcvt.s32.f32 %v457
      %v554 = vcvt.s32.f32 %v458
      %v555 = vcvt.s32.f32 %v459
      %v556 = vcvt.s32.f32 %v460
      %v557 = vcvt.s32.f32 %v461
      %v558 = vcvt.s32.f32 %v462
      %v559 = vcvt.s32.f32 %v463
      %v560 = vcvt.s32.f32 %v464
      %v561 = vcvt.s32.f32 %v465
      %v562 = vcvt.s32.f32 %v466
      %v563 = vcvt.s32.f32 %v467
      %v564 = vcvt.s32.f32 %v468
      %v565 = vcvt.s32.f32 %v469
      %v566 = vcvt.s32.f32 %v470
      %v567 = vcvt.s32.f32 %v471
      %v568 = vcvt.s32.f32 %v472
      %v569 = vcvt.s32.f32 %v473
      %v570 = vcvt.s32.f32 %v474
      %v571 = vcvt.s32.f32 %v475
      %v572 = vcvt.s32.f32 %v476
      %v573 = vcvt.s32.f32 %v477
      %v574 = vcvt.s32.f32 %v478
      %v575 = vcvt.s32.f32 %v479
      %v576 = vcvt.s32.f32 %v480
      %v577 = vcvt.s32.f32 %v481
      %v578 = vcvt.s32.f32 %v482
      %v579 = vcvt.s32.f32 %v483
      %v580 = vpack.c.bf16 %v490, %v484
      %v581 = vpack.c.bf16 %v491, %v485
      %v582 = vpack.c.bf16 %v492, %v486
      %v583 = vpack.c.bf16 %v493, %v487
      %v584 = vpack.c.bf16 %v494, %v488
      %v585 = vpack.c.bf16 %v495, %v489
      %v586 = vpack.c.bf16 %v502, %v496
      %v587 = vpack.c.bf16 %v503, %v497
      %v588 = vpack.c.bf16 %v504, %v498
      %v589 = vpack.c.bf16 %v505, %v499
      %v590 = vpack.c.bf16 %v506, %v500
      %v591 = vpack.c.bf16 %v507, %v501
      %v592 = vpack.c.bf16 %v514, %v508
      %v593 = vpack.c.bf16 %v515, %v509
      %v594 = vpack.c.bf16 %v516, %v510
      %v595 = vpack.c.bf16 %v517, %v511
      %v596 = vpack.c.bf16 %v518, %v512
      %v597 = vpack.c.bf16 %v519, %v513
      %v598 = vpack.c.bf16 %v526, %v520
      %v599 = vpack.c.bf16 %v527, %v521
      %v600 = vpack.c.bf16 %v528, %v522
      %v601 = vpack.c.bf16 %v529, %v523
      %v602 = vpack.c.bf16 %v530, %v524
      %v603 = vpack.c.bf16 %v531, %v525
      %v604 = vpack.c.bf16 %v538, %v532
      %v605 = vpack.c.bf16 %v539, %v533
      %v606 = vpack.c.bf16 %v540, %v534
      %v607 = vpack.c.bf16 %v541, %v535
      %v608 = vpack.c.bf16 %v542, %v536
      %v609 = vpack.c.bf16 %v543, %v537
      %v610 = vpack.c.bf16 %v550, %v544
      %v611 = vpack.c.bf16 %v551, %v545
      %v612 = vpack.c.bf16 %v552, %v546
      %v613 = vpack.c.bf16 %v553, %v547
      %v614 = vpack.c.bf16 %v554, %v548
      %v615 = vpack.c.bf16 %v555, %v549
      %v616 = vpack.c.bf16 %v562, %v556
      %v617 = vpack.c.bf16 %v563, %v557
      %v618 = vpack.c.bf16 %v564, %v558
      %v619 = vpack.c.bf16 %v565, %v559
      %v620 = vpack.c.bf16 %v566, %v560
      %v621 = vpack.c.bf16 %v567, %v561
      %v622 = vpack.c.bf16 %v574, %v568
      %v623 = vpack.c.bf16 %v575, %v569
      %v624 = vpack.c.bf16 %v576, %v570
      %v625 = vpack.c.bf16 %v577, %v571
      %v626 = vpack.c.bf16 %v578, %v572
      %v627 = vpack.c.bf16 %v579, %v573
      %628 = vmatprep.subr.bf16.mxu0 %v623
      %629 = vmatpush1.bf16.msra.mxu0 %v622
      %630 = vmatprep.subr.bf16.mxu0 %v617
      %631 = vmatpush1.bf16.msra.mxu0 %v616
      %632 = vmatprep.subr.bf16.mxu0 %v611
      %633 = vmatpush1.bf16.msra.mxu0 %v610
      %634 = vmatprep.subr.bf16.mxu0 %v605
      %635 = vmatpush1.bf16.msra.mxu0 %v604
      %636 = vmatprep.subr.bf16.mxu0 %v599
      %637 = vmatpush1.bf16.msra.mxu0 %v598
      %638 = vmatprep.subr.bf16.mxu0 %v593
      %639 = vmatpush1.bf16.msra.mxu0 %v592
      %640 = vmatprep.subr.bf16.mxu0 %v587
      %641 = vmatpush1.bf16.msra.mxu0 %v586
      %642 = vmatprep.subr.bf16.mxu0 %v581
      %643 = vmatpush1.bf16.msra.mxu0 %v580
      %644 = vmatprep.subr.bf16.mxu0 0
      %645 = vmatpush2.bf16.msra.mxu0 0
      %646 = vmatprep.subr.bf16.mxu0 0
      %647 = vmatpush2.bf16.msra.mxu0 0
      %648 = vmatprep.subr.bf16.mxu0 0
      %649 = vmatpush2.bf16.msra.mxu0 0
      %650 = vmatprep.subr.bf16.mxu0 0
      %651 = vmatpush2.bf16.msra.mxu0 0
      %652 = vmatprep.subr.bf16.mxu0 0
      %653 = vmatpush2.bf16.msra.mxu0 0
      %654 = vmatprep.subr.bf16.mxu0 0
      %655 = vmatpush2.bf16.msra.mxu0 0
      %656 = vmatprep.subr.bf16.mxu0 0
      %657 = vmatpush2.bf16.msra.mxu0 0
      %658 = vmatprep.subr.bf16.mxu0 0
      %659 = vmatpush2.bf16.msra.mxu0 0
      %660 = vmatprep.mubr.bf16.mxu0 0
      %661 = vmatmul.mubr.bf16.gmra.mxu0 %v171
      %v662 = vpop.f32.mrf.mxu0
      %v663 = vadd.f32 0.0, %v662
      %v664 = vpop.f32.mrf.mxu0
      %v665 = vadd.f32 0.0, %v664
      %v666 = vpop.f32.mrf.mxu0
      %v667 = vpop.f32.mrf.mxu0
      %668 = vdwg.mxu0
      %669 = vmatprep.subr.bf16.mxu0 %v625
      %670 = vmatpush1.bf16.msra.mxu0 %v624
      %671 = vmatprep.subr.bf16.mxu0 %v619
      %672 = vmatpush1.bf16.msra.mxu0 %v618
      %673 = vmatprep.subr.bf16.mxu0 %v613
      %674 = vmatpush1.bf16.msra.mxu0 %v612
      %675 = vmatprep.subr.bf16.mxu0 %v607
      %676 = vmatpush1.bf16.msra.mxu0 %v606
      %677 = vmatprep.subr.bf16.mxu0 %v601
      %678 = vmatpush1.bf16.msra.mxu0 %v600
      %679 = vmatprep.subr.bf16.mxu0 %v595
      %680 = vmatpush1.bf16.msra.mxu0 %v594
      %681 = vmatprep.subr.bf16.mxu0 %v589
      %682 = vmatpush1.bf16.msra.mxu0 %v588
      %683 = vmatprep.subr.bf16.mxu0 %v583
      %684 = vmatpush1.bf16.msra.mxu0 %v582
      %685 = vmatprep.subr.bf16.mxu0 0
      %686 = vmatpush2.bf16.msra.mxu0 0
      %687 = vmatprep.subr.bf16.mxu0 0
      %688 = vmatpush2.bf16.msra.mxu0 0
      %689 = vmatprep.subr.bf16.mxu0 0
      %690 = vmatpush2.bf16.msra.mxu0 0
      %691 = vmatprep.subr.bf16.mxu0 0
      %692 = vmatpush2.bf16.msra.mxu0 0
      %693 = vmatprep.subr.bf16.mxu0 0
      %694 = vmatpush2.bf16.msra.mxu0 0
      %695 = vmatprep.subr.bf16.mxu0 0
      %696 = vmatpush2.bf16.msra.mxu0 0
      %697 = vmatprep.subr.bf16.mxu0 0
      %698 = vmatpush2.bf16.msra.mxu0 0
      %699 = vmatprep.subr.bf16.mxu0 0
      %700 = vmatpush2.bf16.msra.mxu0 0
      %701 = vmatprep.mubr.bf16.mxu0 0
      %702 = vmatmul.mubr.bf16.gmra.mxu0 %v171
      %v703 = vpop.f32.mrf.mxu0
      %v704 = vadd.f32 0.0, %v703
      %v705 = vpop.f32.mrf.mxu0
      %v706 = vadd.f32 0.0, %v705
      %v707 = vpop.f32.mrf.mxu0
      %v708 = vpop.f32.mrf.mxu0
      %709 = vdwg.mxu0
      %710 = vmatprep.subr.bf16.mxu0 %v627
      %711 = vmatpush1.bf16.msra.mxu0 %v626
      %712 = vmatprep.subr.bf16.mxu0 %v621
      %713 = vmatpush1.bf16.msra.mxu0 %v620
      %714 = vmatprep.subr.bf16.mxu0 %v615
      %715 = vmatpush1.bf16.msra.mxu0 %v614
      %716 = vmatprep.subr.bf16.mxu0 %v609
      %717 = vmatpush1.bf16.msra.mxu0 %v608
      %718 = vmatprep.subr.bf16.mxu0 %v603
      %719 = vmatpush1.bf16.msra.mxu0 %v602
      %720 = vmatprep.subr.bf16.mxu0 %v597
      %721 = vmatpush1.bf16.msra.mxu0 %v596
      %722 = vmatprep.subr.bf16.mxu0 %v591
      %723 = vmatpush1.bf16.msra.mxu0 %v590
      %724 = vmatprep.subr.bf16.mxu0 %v585
      %725 = vmatpush1.bf16.msra.mxu0 %v584
      %726 = vmatprep.subr.bf16.mxu0 0
      %727 = vmatpush2.bf16.msra.mxu0 0
      %728 = vmatprep.subr.bf16.mxu0 0
      %729 = vmatpush2.bf16.msra.mxu0 0
      %730 = vmatprep.subr.bf16.mxu0 0
      %731 = vmatpush2.bf16.msra.mxu0 0
      %732 = vmatprep.subr.bf16.mxu0 0
      %733 = vmatpush2.bf16.msra.mxu0 0
      %734 = vmatprep.subr.bf16.mxu0 0
      %735 = vmatpush2.bf16.msra.mxu0 0
      %736 = vmatprep.subr.bf16.mxu0 0
      %737 = vmatpush2.bf16.msra.mxu0 0
      %738 = vmatprep.subr.bf16.mxu0 0
      %739 = vmatpush2.bf16.msra.mxu0 0
      %740 = vmatprep.subr.bf16.mxu0 0
      %741 = vmatpush2.bf16.msra.mxu0 0
      %742 = vmatprep.mubr.bf16.mxu0 0
      %743 = vmatmul.mubr.bf16.gmra.mxu0 %v171
      %v744 = vpop.f32.mrf.mxu0
      %v745 = vadd.f32 0.0, %v744
      %v746 = vpop.f32.mrf.mxu0
      %v747 = vadd.f32 0.0, %v746
      %v748 = vpop.f32.mrf.mxu0
      %v749 = vpop.f32.mrf.mxu0
      %750 = vdwg.mxu0
      %v751 = vadd.f32 %v663, %v706
      %v752 = vadd.f32 %v665, %v745
      %v753 = vadd.f32 %v704, %v747
      %v754 = vsub.f32 %v663, %v706
      %v755 = vsub.f32 %v665, %v745
      %v756 = vsub.f32 %v704, %v747
      %v760 = vrot.slane %v754, 4
      %v761 = vrot.slane %v755, 4
      %v762 = vrot.slane %v756, 4
      %vm766 = vcmask 1043456
      %v767 = vsel %vm766, %v751, %v760
      %v768 = vsel %vm766, %v752, %v761
      %v769 = vsel %vm766, %v753, %v762
      %770 = vst [vmem:[%s167] sm:$0xff] %v767
      %771 = vst [vmem:[%s167 + $0x8] sm:$0xff] %v768
      %772 = vst [vmem:[%s167 + $0x10] sm:$0xff] %v769
      %s773 = smul.u32 3, %s14
      %p774 = scmp.lt.s32.totalorder %s773, 5
      %s775 = scalar_select %p774, %s773, 5
      %s776 = smul.addr %s775, 8
      %s777 = scalar_lea.vmem %s3, %s776
      // Predicated region
      $region33: #{edge_symmetric_embedding.1} parent=31 // pred_check
        %p778 = pneg %p100
      $region34: #{edge_symmetric_embedding.1} parent=31 // pred_check_branch
        %780 = sbr.rel (%p778) target = $region36
      $region35: #{edge_symmetric_embedding.1} parent=31 // pred_region
        %s781 = smul.u32 3, %s14
      $region36: #{edge_symmetric_embedding.1} parent=31 // pred_fallthru
        _
    $region32: #{edge_symmetric_embedding.1} parent=5 // pred_fallthru
      _
    %p782 = scmp.le.s32.totalorder 2, %s9
    // Predicated region
    $region37: #{edge_symmetric_embedding.1} parent=5 // pred_check
      %p783 = pneg %p782
    $region38: #{edge_symmetric_embedding.1} parent=5 // pred_check_branch
      %785 = sbr.rel (%p783) target = $region40
    $region39: #{edge_symmetric_embedding.1} parent=5 // pred_region
      %s786 = ssub.s32 %s9, 2
      // Predicated region
      $region41: #{edge_symmetric_embedding.1} parent=39 // pred_check
        %p787 = pneg %p106
      $region42: #{edge_symmetric_embedding.1} parent=39 // pred_check_branch
        %789 = sbr.rel (%p787) target = $region44
      $region43: #{edge_symmetric_embedding.1} parent=39 // pred_region
        %s790 = smul.u32 3, %s15
        %p791 = scmp.lt.s32.totalorder %s790, 5
        %s792 = scalar_select %p791, %s790, 5
        %s793 = smul.addr %s792, 8
        %s794 = scalar_lea.vmem %s3, %s793
      $region44: #{edge_symmetric_embedding.1} parent=39 // pred_fallthru
        _
    $region40: #{edge_symmetric_embedding.1} parent=5 // pred_fallthru
      _
  $region6: #{edge_symmetric_embedding.1} parent=0 // loop_footer
    %s13 = sadd.s32 1, %s9
  $region7: #{edge_symmetric_embedding.1} parent=0 // loop_footer_branch
    %8 = sbr.rel target = $region3
  $region8: #{edge_symmetric_embedding.1} parent=0 // loop_exit
    _

</llo_original>
